<compile_context>
chip_gen: v7x
topology: tpu7x:2x2x1
jax: 0.10.0
libtpu: 0.0.40
codegen_flags: <defaults>
</compile_context>

<pallas_src>
import math
import functools

import jax
import jax.numpy as jnp
from jax.experimental import pallas as pl
from jax.experimental.pallas import tpu as pltpu


_MAX_BLOCK_ROWS = 512  # 512 x 512 f32 = 1 MiB per block buffer


def _pick_lane(total):
    """Lane-dense last dim.  Prefer widths that divide `total` (no pad/slice)."""
    # Prefer wide lanes with decent sublane fill (>=16 rows covers bf16 tiles).
    for lane in (512, 256, 128):
        if total % lane == 0 and total // lane >= 16:
            return lane
    # Small inputs: smallest dividing lane first -> better sublane utilization.
    for lane in (128, 256, 512):
        if total % lane == 0:
            return lane
    return 128  # ragged: fall back to padding


def _pick_block_rows(rows):
    """Block row count: multiple of 16 (f32/bf16 safe), divides `rows`,
    <= _MAX_BLOCK_ROWS, and leaves >= 2 grid steps for v7x megacore when the
    input is large enough.  Otherwise use a single full-array block (legal)."""
    if rows % 16 != 0 or rows < 128:
        return rows
    limit = min(_MAX_BLOCK_ROWS, rows // 2)   # >= 2 grid steps
    best = 16
    d = 16
    while d <= limit:
        if rows % d == 0:
            best = d
        d += 16
    return best


def _rician_csi_kernel(x_ref, zhr_ref, zhi_ref, znr_ref, zni_ref, out_ref, *,
                       h_los, h_nlos_std, noise_std):
    """Fused Rician fading + AWGN + perfect-CSI equalization (real output)."""
    x = x_ref[...].astype(jnp.float32)
    h_r = h_los + zhr_ref[...] * h_nlos_std
    h_i = zhi_ref[...] * h_nlos_std
    h_abs_sq = h_r * h_r + h_i * h_i
    # Re(rx * conj(h)) = |h|^2 * x + noise_std * (znr*h_r + zni*h_i)
    num = h_abs_sq * x + noise_std * (znr_ref[...] * h_r + zni_ref[...] * h_i)
    out = num / jnp.maximum(h_abs_sq, 1e-9)
    out_ref[...] = out.astype(out_ref.dtype)


def _rician_no_csi_kernel(x_ref, zhr_ref, znr_ref, out_ref, *,
                          h_los, h_nlos_std, noise_std):
    """Re(h*x + n): the imaginary-part randoms are dead, so they are not drawn."""
    x = x_ref[...].astype(jnp.float32)
    h_r = h_los + zhr_ref[...] * h_nlos_std
    out_ref[...] = (h_r * x + noise_std * znr_ref[...]).astype(out_ref.dtype)


def rician_channel(tx, n_var, key, *, K=1.0, perfect_csi=True):
    """Pallas-TPU implementation of RicianChannel.forward.

    tx:    [batch, seq_len, latent_dim] real array
    n_var: noise variance (python float, static)
    key:   jax PRNG key for the channel / noise realizations
    """
    if K < 0:
        raise ValueError("Rician K factor must be non-negative.")

    B, S, D = tx.shape
    total = B * S * D

    # Lane-dense re-tiling: the op is purely elementwise, so any bijective
    # reshape is valid.
    lane = _pick_lane(total)
    rows = pl.cdiv(total, lane)
    padded_total = rows * lane

    flat = tx.reshape(-1)                  # native dtype; cast in-kernel
    if padded_total != total:              # rare fallback (lane doesn't divide)
        flat = jnp.pad(flat, (0, padded_total - total))
    x2 = flat.reshape(rows, lane)

    # Gaussian fields generated at the tiled shape (no extra reshape/pad pass).
    n_normals = 4 if perfect_csi else 2
    keys = jax.random.split(key, n_normals)
    normals = [jax.random.normal(k, (rows, lane), jnp.float32) for k in keys]

    los_power = K / (K + 1.0)
    nlos_power = 1.0 / (K + 1.0)
    kernel = functools.partial(
        _rician_csi_kernel if perfect_csi else _rician_no_csi_kernel,
        h_los=float(math.sqrt(los_power)),              # plain Python floats ->
        h_nlos_std=float(math.sqrt(nlos_power / 2.0)),  # baked as literals
        noise_std=float(math.sqrt(n_var / 2.0)),
    )

    block_rows = _pick_block_rows(rows)
    grid = (rows // block_rows,)
    spec = pl.BlockSpec((block_rows, lane), lambda i: (i, 0))

    out2 = pl.pallas_call(
        kernel,
        out_shape=jax.ShapeDtypeStruct((rows, lane), tx.dtype),
        grid=grid,
        in_specs=[spec] * (1 + n_normals),
        out_specs=spec,
        compiler_params=pltpu.CompilerParams(
            dimension_semantics=("parallel",),
            vmem_limit_bytes=32 * 1024 * 1024,
        ),
    )(x2, *normals)

    out = out2.reshape(-1)
    if padded_total != total:
        out = out[:total]
    return out.reshape(B, S, D)


if __name__ == "__main__":
    key = jax.random.PRNGKey(0)
    k_tx, k_chan1, k_chan2 = jax.random.split(key, 3)

    # Small shapes implied by the forward signature: [batch, seq_len, latent_dim]
    B, S, D = 2, 8, 32
    tx = jax.random.normal(k_tx, (B, S, D), jnp.float32)
    n_var = 0.1

    # perfect_csi=True path
    rx = rician_channel(tx, n_var, k_chan1, K=1.0, perfect_csi=True)
    rx = jax.block_until_ready(rx)
    assert rx.shape == (B, S, D), rx.shape
    assert rx.dtype == tx.dtype, rx.dtype
    assert bool(jnp.all(jnp.isfinite(rx)))

    # perfect_csi=False path (no equalization)
    rx2 = rician_channel(tx, n_var, k_chan2, K=1.0, perfect_csi=False)
    rx2 = jax.block_until_ready(rx2)
    assert rx2.shape == (B, S, D), rx2.shape
    assert bool(jnp.all(jnp.isfinite(rx2)))

    # Deterministic check: with zero noise, perfect-CSI equalization recovers tx
    # exactly (h*x*conj(h)/|h|^2 == x), independent of the fading realization.
    rx0 = rician_channel(tx, 0.0, k_chan1, K=1.0, perfect_csi=True)
    rx0 = jax.block_until_ready(rx0)
    assert bool(jnp.allclose(rx0, tx, atol=1e-5, rtol=1e-5))

    print("KERNEL_OK")
</pallas_src>

<mosaic_0001>
module attributes {stable_mosaic.version = 11 : i64} {
  func.func @_rician_csi_kernel(%arg0: i32, %arg1: memref<4x128xf32, #tpu.memory_space<vmem>>, %arg2: memref<4x128xf32, #tpu.memory_space<vmem>>, %arg3: memref<4x128xf32, #tpu.memory_space<vmem>>, %arg4: memref<4x128xf32, #tpu.memory_space<vmem>>, %arg5: memref<4x128xf32, #tpu.memory_space<vmem>>, %arg6: memref<4x128xf32, #tpu.memory_space<vmem>>) attributes {dimension_semantics = [#tpu.dimension_semantics<parallel>], iteration_bounds = array<i64: 1>, scalar_prefetch = 0 : i64, scratch_operands = 0 : i64, tpu.core_type = #tpu.core_type<tc>, window_params = [{transform_indices = @transform_0, window_bounds = array<i64: 4, 128>}, {transform_indices = @transform_1, window_bounds = array<i64: 4, 128>}, {transform_indices = @transform_2, window_bounds = array<i64: 4, 128>}, {transform_indices = @transform_3, window_bounds = array<i64: 4, 128>}, {transform_indices = @transform_4, window_bounds = array<i64: 4, 128>}, {transform_indices = @transform_5, window_bounds = array<i64: 4, 128>}]} {
    %c0 = arith.constant 0 : index
    %c0_0 = arith.constant 0 : index
    %0 = vector.load %arg1[%c0, %c0_0] : memref<4x128xf32, #tpu.memory_space<vmem>>, vector<4x128xf32>
    %c0_1 = arith.constant 0 : index
    %c0_2 = arith.constant 0 : index
    %1 = vector.load %arg2[%c0_1, %c0_2] : memref<4x128xf32, #tpu.memory_space<vmem>>, vector<4x128xf32>
    %cst = arith.constant 5.000000e-01 : f32
    %2 = vector.broadcast %cst : f32 to vector<4x128xf32>
    %3 = arith.mulf %1, %2 : vector<4x128xf32>
    %cst_3 = arith.constant 0.707106769 : f32
    %4 = vector.broadcast %cst_3 : f32 to vector<4x128xf32>
    %5 = arith.addf %4, %3 : vector<4x128xf32>
    %c0_4 = arith.constant 0 : index
    %c0_5 = arith.constant 0 : index
    %6 = vector.load %arg3[%c0_4, %c0_5] : memref<4x128xf32, #tpu.memory_space<vmem>>, vector<4x128xf32>
    %cst_6 = arith.constant 5.000000e-01 : f32
    %7 = vector.broadcast %cst_6 : f32 to vector<4x128xf32>
    %8 = arith.mulf %6, %7 : vector<4x128xf32>
    %9 = arith.mulf %5, %5 : vector<4x128xf32>
    %10 = arith.mulf %8, %8 : vector<4x128xf32>
    %11 = arith.addf %9, %10 : vector<4x128xf32>
    %12 = arith.mulf %11, %0 : vector<4x128xf32>
    %c0_7 = arith.constant 0 : index
    %c0_8 = arith.constant 0 : index
    %13 = vector.load %arg4[%c0_7, %c0_8] : memref<4x128xf32, #tpu.memory_space<vmem>>, vector<4x128xf32>
    %14 = arith.mulf %13, %5 : vector<4x128xf32>
    %c0_9 = arith.constant 0 : index
    %c0_10 = arith.constant 0 : index
    %15 = vector.load %arg5[%c0_9, %c0_10] : memref<4x128xf32, #tpu.memory_space<vmem>>, vector<4x128xf32>
    %16 = arith.mulf %15, %8 : vector<4x128xf32>
    %17 = arith.addf %14, %16 : vector<4x128xf32>
    %cst_11 = arith.constant 0.223606795 : f32
    %18 = vector.broadcast %cst_11 : f32 to vector<4x128xf32>
    %19 = arith.mulf %18, %17 : vector<4x128xf32>
    %20 = arith.addf %12, %19 : vector<4x128xf32>
    %cst_12 = arith.constant 9.99999971E-10 : f32
    %21 = vector.broadcast %cst_12 : f32 to vector<4x128xf32>
    %22 = arith.maximumf %11, %21 : vector<4x128xf32>
    %23 = arith.divf %20, %22 : vector<4x128xf32>
    %c0_13 = arith.constant 0 : index
    %c0_14 = arith.constant 0 : index
    %24 = vector.load %arg6[%c0_13, %c0_14] : memref<4x128xf32, #tpu.memory_space<vmem>>, vector<4x128xf32>
    tpu.vector_store %arg6[%c0_13, %c0_14], %23 {strides = array<i32>} : memref<4x128xf32, #tpu.memory_space<vmem>>, vector<4x128xf32>,
    return
  }
  func.func @transform_0(%arg0: i32) -> (i32, i32) {
    %c0_i32 = arith.constant 0 : i32
    %c0_i32_0 = arith.constant 0 : i32
    return %arg0, %c0_i32 : i32, i32
  }
  func.func @transform_1(%arg0: i32) -> (i32, i32) {
    %c0_i32 = arith.constant 0 : i32
    %c0_i32_0 = arith.constant 0 : i32
    return %arg0, %c0_i32 : i32, i32
  }
  func.func @transform_2(%arg0: i32) -> (i32, i32) {
    %c0_i32 = arith.constant 0 : i32
    %c0_i32_0 = arith.constant 0 : i32
    return %arg0, %c0_i32 : i32, i32
  }
  func.func @transform_3(%arg0: i32) -> (i32, i32) {
    %c0_i32 = arith.constant 0 : i32
    %c0_i32_0 = arith.constant 0 : i32
    return %arg0, %c0_i32 : i32, i32
  }
  func.func @transform_4(%arg0: i32) -> (i32, i32) {
    %c0_i32 = arith.constant 0 : i32
    %c0_i32_0 = arith.constant 0 : i32
    return %arg0, %c0_i32 : i32, i32
  }
  func.func @transform_5(%arg0: i32) -> (i32, i32) {
    %c0_i32 = arith.constant 0 : i32
    %c0_i32_0 = arith.constant 0 : i32
    return %arg0, %c0_i32 : i32, i32
  }
}

</mosaic_0001>

<llo_original>
// kernel: tpu_custom_call.1
$region0: #{tpu_custom_call.1}
  #allocation0 [shape = 'u32[]', space=smem, size = 0x4, offset = 0x4, fixed_abs, tag = 'smem constant byte address 0x4 - core index']
  #allocation1 [shape = 'u32[144,128]{1,0:T(1,128)}', space=vmem, size = 0x12000, scoped, tag = 'internal scratch']
  %s0 = inlined_call_operand.hbm [shape: f32[4,128], index: 0, kind: input, shape index: {}]
  %s1 = inlined_call_operand.hbm [shape: f32[4,128], index: 1, kind: input, shape index: {}]
  %s2 = inlined_call_operand.vmem [shape: f32[4,128], index: 2, kind: input, shape index: {}]
  %s3 = inlined_call_operand.vmem [shape: f32[4,128], index: 3, kind: input, shape index: {}]
  %s4 = inlined_call_operand.vmem [shape: f32[4,128], index: 4, kind: input, shape index: {}]
  %s5 = inlined_call_operand.hbm [shape: f32[4,128], index: 5, kind: output, shape index: {}]
  %s6 = sld [smem:[#allocation0]]
  $region38: #{tpu_custom_call.1} parent=0
    _
  %s8 = ssub.s32 1, %s6
  %s9 = scalar_select 0, %s8, %s6
  $region1: #{tpu_custom_call.1} parent=0
    #allocation2 [shape = 'u8[2048]{0}', space=vmem, size = 0x800, scoped, tag = 'input window, operand 0, single buffered']
    #allocation3 [shape = 's32[1]{0}', space=sflag, size = 0x4, scoped, tag = 'scoped memory for tpu_custom_call.1']
    #allocation4 [shape = 's32[1]{0}', space=sflag, size = 0x4, scoped, tag = 'scoped memory for tpu_custom_call.1']
    #allocation5 [shape = 'u8[2048]{0}', space=vmem, size = 0x800, scoped, tag = 'input window, operand 1, single buffered']
    #allocation6 [shape = 's32[1]{0}', space=sflag, size = 0x4, scoped, tag = 'scoped memory for tpu_custom_call.1']
    #allocation7 [shape = 'u8[2048]{0}', space=vmem, size = 0x800, scoped, tag = 'output window, operand 0, single buffered']
    %10 = vsyncpa [#allocation3], 0
    %11 = vsyncpa [#allocation6], 0
    %12 = vsyncpa [#allocation4], 0
    // Predicated region
    $region2: #{tpu_custom_call.1} parent=1 // pred_check
      _
    $region3: #{tpu_custom_call.1} parent=1 // pred_check_branch
      %14 = sbr.rel (0) target = $region5
    $region4: #{tpu_custom_call.1} parent=1 // pred_region
      %s16 = ssub.s32 64, 64
      %17 = vsyncadd [#allocation3], %s16
      %s19 = sshll.u32 [#allocation2], 4
      %s20 = int_to_ptr.vmem [resolvable:$true] %s19
      %22 = dma.hbm_to_vmem [thread:$0]  %s0, 64, %s20, [#allocation3]
    $region5: #{tpu_custom_call.1} parent=1 // pred_fallthru
      _
    // Predicated region
    $region6: #{tpu_custom_call.1} parent=1 // pred_check
      _
    $region7: #{tpu_custom_call.1} parent=1 // pred_check_branch
      %24 = sbr.rel (0) target = $region9
    $region8: #{tpu_custom_call.1} parent=1 // pred_region
      %s26 = ssub.s32 64, 64
      %27 = vsyncadd [#allocation6], %s26
      %s29 = sshll.u32 [#allocation5], 4
      %s30 = int_to_ptr.vmem [resolvable:$true] %s29
      %32 = dma.hbm_to_vmem [thread:$0]  %s1, 64, %s30, [#allocation6]
    $region9: #{tpu_custom_call.1} parent=1 // pred_fallthru
      _
    // Predicated region
    $region10: #{tpu_custom_call.1} parent=1 // pred_check
      _
    $region11: #{tpu_custom_call.1} parent=1 // pred_check_branch
      %34 = sbr.rel (0) target = $region13
    $region12: #{tpu_custom_call.1} parent=1 // pred_region
      _
    $region13: #{tpu_custom_call.1} parent=1 // pred_fallthru
      _
    // Predicated region
    $region14: #{tpu_custom_call.1} parent=1 // pred_check
      _
    $region15: #{tpu_custom_call.1} parent=1 // pred_check_branch
      %36 = sbr.rel (0) target = $region17
    $region16: #{tpu_custom_call.1} parent=1 // pred_region
      _
    $region17: #{tpu_custom_call.1} parent=1 // pred_fallthru
      _
    // Predicated region
    $region18: #{tpu_custom_call.1} parent=1 // pred_check
      _
    $region19: #{tpu_custom_call.1} parent=1 // pred_check_branch
      %38 = sbr.rel (0) target = $region21
    $region20: #{tpu_custom_call.1} parent=1 // pred_region
      _
    $region21: #{tpu_custom_call.1} parent=1 // pred_fallthru
      _
    // Predicated region
    $region22: #{tpu_custom_call.1} parent=1 // pred_check
      _
    $region23: #{tpu_custom_call.1} parent=1 // pred_check_branch
      %40 = sbr.rel (0) target = $region25
    $region24: #{tpu_custom_call.1} parent=1 // pred_region
      %41 = dma.done [#allocation3], 64
    $region25: #{tpu_custom_call.1} parent=1 // pred_fallthru
      _
    // Predicated region
    $region26: #{tpu_custom_call.1} parent=1 // pred_check
      _
    $region27: #{tpu_custom_call.1} parent=1 // pred_check_branch
      %43 = sbr.rel (0) target = $region29
    $region28: #{tpu_custom_call.1} parent=1 // pred_region
      %44 = dma.done [#allocation6], 64
    $region29: #{tpu_custom_call.1} parent=1 // pred_fallthru
      _
    %v45 = vld [vmem:[#allocation2] sm:$0xf]
    %v46 = vld [vmem:[#allocation5] sm:$0xf]
    %v47 = vmul.f32 %v46, 0.5
    %v48 = vadd.f32 %v47, 0.70710677
    %v49 = vld [vmem:[%s2] sm:$0xf]
    %v50 = vmul.f32 %v49, 0.5
    %v51 = vmul.f32 %v48, %v48
    %v52 = vmul.f32 %v50, %v50
    %v53 = vadd.f32 %v51, %v52
    %v54 = vmul.f32 %v53, %v45
    %v55 = vld [vmem:[%s3] sm:$0xf]
    %v56 = vmul.f32 %v55, %v48
    %v57 = vld [vmem:[%s4] sm:$0xf]
    %v58 = vmul.f32 %v57, %v50
    %v59 = vadd.f32 %v56, %v58
    %v60 = vmul.f32 %v59, 0.2236068
    %v61 = vadd.f32 %v54, %v60
    %v62 = vmax.f32 %v53, 1e-09
    %v63 = vrcp.pop %v62
    %v64 = vmul.f32 %v61, %v63
    %65 = vst [vmem:[#allocation7] sm:$0xf] %v64
    // Predicated region
    $region30: #{tpu_custom_call.1} parent=1 // pred_check
      _
    $region31: #{tpu_custom_call.1} parent=1 // pred_check_branch
      %67 = sbr.rel (0) target = $region33
    $region32: #{tpu_custom_call.1} parent=1 // pred_region
      %s69 = ssub.s32 64, 64
      %70 = vsyncadd [#allocation4], %s69
      %s72 = sshll.u32 [#allocation7], 4
      %s73 = int_to_ptr.vmem [resolvable:$true] %s72
      %75 = dma.vmem_to_hbm [thread:$0]  %s73, 64, %s5, [#allocation4]
    $region33: #{tpu_custom_call.1} parent=1 // pred_fallthru
      _
    // Predicated region
    $region34: #{tpu_custom_call.1} parent=1 // pred_check
      _
    $region35: #{tpu_custom_call.1} parent=1 // pred_check_branch
      %77 = sbr.rel (0) target = $region37
    $region36: #{tpu_custom_call.1} parent=1 // pred_region
      %78 = dma.done [#allocation4], 64
    $region37: #{tpu_custom_call.1} parent=1 // pred_fallthru
      _
    %79 = vsyncpa [#allocation3], 1
    %80 = vsyncpa [#allocation6], 1
    %81 = vsyncpa [#allocation4], 1

</llo_original>
